<compile_context>
chip_gen: v7x
topology: tpu7x:2x2x1
jax: 0.10.0
libtpu: 0.0.40
codegen_flags: <defaults>
</compile_context>

<pallas_src>
import jax
import jax.numpy as jnp
import numpy as np
from jax.experimental import pallas as pl
from jax.experimental.pallas import tpu as pltpu


_C_CHUNK = 8  # sublane slab size for the chunked channel reductions


def _chunked_channel_sum(x_ref, per_slab_fn):
    """f32 sum over channels of per_slab_fn(x), processed in 8-sublane slabs.

    x_ref is the (1, C, HW_TILE) VMEM block. Chunking bounds the live
    elementwise temporaries to (<=8, HW_TILE), so the VMEM/vreg footprint
    stays ~1x the input tile and HW_TILE can be as large as the budget allows.
    """
    c = x_ref.shape[1]
    hw = x_ref.shape[2]
    n_full = c // _C_CHUNK
    rem = c - n_full * _C_CHUNK

    def body(i, acc):
        start = pl.multiple_of(i * _C_CHUNK, _C_CHUNK)
        slab = x_ref[0, pl.ds(start, _C_CHUNK), :].astype(jnp.float32)
        return acc + jnp.sum(per_slab_fn(slab), axis=0, keepdims=True)

    acc = jnp.zeros((1, hw), jnp.float32)
    if n_full > 0:
        acc = jax.lax.fori_loop(0, n_full, body, acc, unroll=True)
    if rem > 0:
        slab = x_ref[0, pl.ds(n_full * _C_CHUNK, rem), :].astype(jnp.float32)
        acc = acc + jnp.sum(per_slab_fn(slab), axis=0, keepdims=True)
    return acc


def gap_skp_kernel(w_ref, x_ref, o_ref):
    # w_ref: (2,) float32 in SMEM -- 1x1 conv weights (w0 for avg, w1 for skew)
    # x_ref: (1, C, HW_TILE) VMEM block for (batch n, spatial tile s)
    # o_ref: (1, 1, HW_TILE) VMEM output block
    c = x_ref.shape[1]
    inv_c = jnp.float32(1.0 / c)

    # Pass 1: channel mean (f32 accumulation).
    s1 = _chunked_channel_sum(x_ref, lambda s: s)         # (1, HW_TILE)
    avg = s1 * inv_c

    # Pass 2: sum_c (x - avg)^3, two-pass form (numerically stable), chunked.
    def centered_cube(slab):
        d = slab - avg
        return d * d * d

    s3 = _chunked_channel_sum(x_ref, centered_cube)       # (1, HW_TILE)
    skew = s3 * inv_c

    mixed = w_ref[0] * avg + w_ref[1] * skew               # 1x1 conv (2 -> 1), no bias
    o_ref[0] = jnp.maximum(mixed, 0.0).astype(o_ref.dtype)  # ReLU


def _vmem_budget_bytes():
    """Scoped-VMEM budget per generation (conservative for v7x / unknown)."""
    try:
        kind = jax.devices()[0].device_kind.lower()
    except Exception:
        kind = ""
    if ("v4" in kind) or ("v5" in kind) or ("v6" in kind):
        return 96 * 1024 * 1024   # 128 MiB physical VMEM on v4/v5e/v5p/v6e
    return 40 * 1024 * 1024       # v7x has only 64 MiB physical: stay conservative


def _choose_hw_tile(C, HW, itemsize, budget):
    # Double-buffered input block should take roughly half the budget; leave
    # the rest for slab temporaries, (1, HW_TILE) accumulators and the output.
    per_tile_budget = budget // 4
    max_lanes = per_tile_budget // max(1, C * itemsize)
    max_lanes = max(128, (max_lanes // 128) * 128)
    hw_tile = min(HW, 8192, max_lanes)
    if hw_tile < HW:
        hw_tile = max(128, (hw_tile // 128) * 128)   # keep tiles lane-dense
    return hw_tile


def gap_skp_sp(x_nchw, w, hw_tile=None):
    """x_nchw: (N, C, H, W) float32; w: (2,) float32 (1x1 conv weight, flat)."""
    N, C, H, W = x_nchw.shape
    HW = H * W
    x = x_nchw.reshape(N, C, HW)

    budget = _vmem_budget_bytes()
    if hw_tile is None:
        hw_tile = _choose_hw_tile(C, HW, jnp.dtype(x.dtype).itemsize, budget)
    hw_tile = min(hw_tile, HW)
    n_hw = pl.cdiv(HW, hw_tile)

    out = pl.pallas_call(
        gap_skp_kernel,
        out_shape=jax.ShapeDtypeStruct((N, 1, HW), x.dtype),
        grid=(N, n_hw),
        in_specs=[
            pl.BlockSpec(memory_space=pltpu.MemorySpace.SMEM),        # weights (2,)
            pl.BlockSpec((1, C, hw_tile), lambda n, s: (n, 0, s)),    # x tile
        ],
        out_specs=pl.BlockSpec((1, 1, hw_tile), lambda n, s: (n, 0, s)),
        compiler_params=pltpu.CompilerParams(
            dimension_semantics=("parallel", "parallel"),   # shards across v7x's 2 TCs
            vmem_limit_bytes=budget,
        ),
    )(w, x)
    return out.reshape(N, 1, H, W)


def reference(x_nchw, w):
    avg = jnp.mean(x_nchw, axis=1, keepdims=True)
    xc = x_nchw - avg
    skew = jnp.sum(xc ** 3, axis=1, keepdims=True) / x_nchw.shape[1]
    mixed = w[0] * avg + w[1] * skew
    return jnp.maximum(mixed, 0.0)


if __name__ == "__main__":
    key = jax.random.PRNGKey(0)
    kx, kw, kx2 = jax.random.split(key, 3)

    # nn.Conv2d(2, 1, 1, bias=False) weight has shape (1, 2, 1, 1); keep it flat (2,).
    fan_in = 2
    bound = 1.0 / np.sqrt(fan_in)
    w = jax.random.uniform(kw, (2,), dtype=jnp.float32, minval=-bound, maxval=bound)

    # Test 1: nominal small shape (single spatial tile, C < one sublane slab).
    N, C, H, W = 2, 4, 16, 16
    x = jax.random.normal(kx, (N, C, H, W), dtype=jnp.float32)
    out = gap_skp_sp(x, w)
    jax.block_until_ready(out)
    ref = reference(x, w)
    np.testing.assert_allclose(np.asarray(out), np.asarray(ref), rtol=1e-5, atol=1e-5)
    assert out.shape == (N, 1, H, W)

    # Test 2: exercises the chunked channel loop with a remainder (C=20 ->
    # 2 full 8-sublane slabs + 4) and a multi-tile spatial grid with a
    # partial last tile (HW=300, hw_tile=128 -> 3 spatial grid steps).
    x2 = jax.random.normal(kx2, (2, 20, 10, 30), dtype=jnp.float32)
    out2 = gap_skp_sp(x2, w, hw_tile=128)
    jax.block_until_ready(out2)
    ref2 = reference(x2, w)
    np.testing.assert_allclose(np.asarray(out2), np.asarray(ref2), rtol=1e-5, atol=1e-5)

    print("KERNEL_OK")
</pallas_src>

<mosaic_0001>
module attributes {stable_mosaic.version = 11 : i64} {
  func.func @gap_skp_kernel(%arg0: i32, %arg1: i32, %arg2: memref<2xf32, #tpu.memory_space<smem>>, %arg3: memref<1x4x256xf32, #tpu.memory_space<vmem>>, %arg4: memref<1x1x256xf32, #tpu.memory_space<vmem>>) attributes {dimension_semantics = [#tpu.dimension_semantics<parallel>, #tpu.dimension_semantics<parallel>], iteration_bounds = array<i64: 2, 1>, scalar_prefetch = 0 : i64, scratch_operands = 0 : i64, tpu.core_type = #tpu.core_type<tc>, window_params = [{transform_indices = @transform_0, window_bounds = array<i64: 2>}, {transform_indices = @transform_1, window_bounds = array<i64: 1, 4, 256>}, {transform_indices = @transform_2, window_bounds = array<i64: 1, 1, 256>}]} {
    %cst = arith.constant 0.000000e+00 : f32
    %0 = vector.broadcast %cst : f32 to vector<1x256xf32>
    %c0 = arith.constant 0 : index
    %c0_0 = arith.constant 0 : index
    %c0_1 = arith.constant 0 : index
    %1 = vector.load %arg3[%c0, %c0_0, %c0_1] : memref<1x4x256xf32, #tpu.memory_space<vmem>>, vector<1x4x256xf32>
    %2 = vector.shape_cast %1 : vector<1x4x256xf32> to vector<4x256xf32>
    %cst_2 = arith.constant dense<0.000000e+00> : vector<256xf32>
    %3 = vector.multi_reduction <add>, %2, %cst_2 [0] : vector<4x256xf32> to vector<256xf32>
    %4 = vector.shape_cast %3 : vector<256xf32> to vector<1x256xf32>
    %5 = arith.addf %0, %4 : vector<1x256xf32>
    %cst_3 = arith.constant 2.500000e-01 : f32
    %6 = vector.broadcast %cst_3 : f32 to vector<1x256xf32>
    %7 = arith.mulf %5, %6 : vector<1x256xf32>
    %cst_4 = arith.constant 0.000000e+00 : f32
    %8 = vector.broadcast %cst_4 : f32 to vector<1x256xf32>
    %c0_5 = arith.constant 0 : index
    %c0_6 = arith.constant 0 : index
    %c0_7 = arith.constant 0 : index
    %9 = vector.load %arg3[%c0_5, %c0_6, %c0_7] : memref<1x4x256xf32, #tpu.memory_space<vmem>>, vector<1x4x256xf32>
    %10 = vector.shape_cast %9 : vector<1x4x256xf32> to vector<4x256xf32>
    %11 = vector.broadcast %7 : vector<1x256xf32> to vector<4x256xf32>
    %12 = arith.subf %10, %11 : vector<4x256xf32>
    %13 = arith.mulf %12, %12 : vector<4x256xf32>
    %14 = arith.mulf %13, %12 : vector<4x256xf32>
    %cst_8 = arith.constant dense<0.000000e+00> : vector<256xf32>
    %15 = vector.multi_reduction <add>, %14, %cst_8 [0] : vector<4x256xf32> to vector<256xf32>
    %16 = vector.shape_cast %15 : vector<256xf32> to vector<1x256xf32>
    %17 = arith.addf %8, %16 : vector<1x256xf32>
    %cst_9 = arith.constant 2.500000e-01 : f32
    %18 = vector.broadcast %cst_9 : f32 to vector<1x256xf32>
    %19 = arith.mulf %17, %18 : vector<1x256xf32>
    %c0_10 = arith.constant 0 : index
    %20 = memref.load %arg2[%c0_10] : memref<2xf32, #tpu.memory_space<smem>>
    %21 = vector.broadcast %20 : f32 to vector<1x256xf32>
    %22 = arith.mulf %21, %7 : vector<1x256xf32>
    %c1 = arith.constant 1 : index
    %23 = memref.load %arg2[%c1] : memref<2xf32, #tpu.memory_space<smem>>
    %24 = vector.broadcast %23 : f32 to vector<1x256xf32>
    %25 = arith.mulf %24, %19 : vector<1x256xf32>
    %26 = arith.addf %22, %25 : vector<1x256xf32>
    %cst_11 = arith.constant 0.000000e+00 : f32
    %27 = vector.broadcast %cst_11 : f32 to vector<1x256xf32>
    %28 = arith.maximumf %26, %27 : vector<1x256xf32>
    %c0_12 = arith.constant 0 : index
    %c0_13 = arith.constant 0 : index
    %c0_14 = arith.constant 0 : index
    %29 = vector.load %arg4[%c0_12, %c0_13, %c0_14] : memref<1x1x256xf32, #tpu.memory_space<vmem>>, vector<1x1x256xf32>
    %30 = vector.shape_cast %29 : vector<1x1x256xf32> to vector<1x256xf32>
    %31 = vector.shape_cast %28 : vector<1x256xf32> to vector<1x1x256xf32>
    tpu.vector_store %arg4[%c0_12, %c0_13, %c0_14], %31 {strides = array<i32>} : memref<1x1x256xf32, #tpu.memory_space<vmem>>, vector<1x1x256xf32>,
    return
  }
  func.func @transform_0(%arg0: i32, %arg1: i32) -> i32 {
    %c0_i32 = arith.constant 0 : i32
    %c0_i32_0 = arith.constant 0 : i32
    return %c0_i32 : i32
  }
  func.func @transform_1(%arg0: i32, %arg1: i32) -> (i32, i32, i32) {
    %c0_i32 = arith.constant 0 : i32
    %c0_i32_0 = arith.constant 0 : i32
    return %arg0, %c0_i32, %arg1 : i32, i32, i32
  }
  func.func @transform_2(%arg0: i32, %arg1: i32) -> (i32, i32, i32) {
    %c0_i32 = arith.constant 0 : i32
    %c0_i32_0 = arith.constant 0 : i32
    return %arg0, %c0_i32, %arg1 : i32, i32, i32
  }
}

</mosaic_0001>

<llo_original>
// kernel: tpu_custom_call.1
$region0: #{tpu_custom_call.1}
  #allocation0 [shape = 'u32[]', space=smem, size = 0x4, offset = 0x4, fixed_abs, tag = 'smem constant byte address 0x4 - core index']
  #allocation1 [shape = 'u32[144,128]{1,0:T(1,128)}', space=vmem, size = 0x12000, scoped, tag = 'internal scratch']
  %s0 = inlined_call_operand.hbm [shape: f32[2], index: 0, kind: input, shape index: {}]
  %s1 = inlined_call_operand.hbm [shape: f32[2,4,256], index: 1, kind: input, shape index: {}]
  %s2 = inlined_call_operand.hbm [shape: f32[2,1,256], index: 2, kind: output, shape index: {}]
  %s3 = sld [smem:[#allocation0]]
  $region49: #{tpu_custom_call.1} parent=0
    _
  %s5 = ssub.s32 1, %s3
  %s6 = scalar_select 0, %s5, %s3
  $region1: #{tpu_custom_call.1} parent=0
    #allocation2 [shape = 'u8[512]{0}', space=smem, size = 0x200, scoped, tag = 'input window, operand 0, single buffered']
    #allocation3 [shape = 's32[2]{0}', space=sflag, size = 0x8, scoped, tag = 'scoped memory for tpu_custom_call.1']
    #allocation4 [shape = 's32[2]{0}', space=sflag, size = 0x8, scoped, tag = 'scoped memory for tpu_custom_call.1']
    #allocation5 [shape = 's32[2]{0}', space=sflag, size = 0x8, scoped, tag = 'scoped memory for tpu_custom_call.1']
    #allocation6 [shape = 'u8[8192]{0}', space=vmem, size = 0x2000, scoped, tag = 'input window, operand 1']
    #allocation7 [shape = 'u8[2048]{0}', space=vmem, size = 0x800, scoped, tag = 'output window, operand 0']
    %7 = vsyncpa [#allocation5], 0
    %8 = vsyncpa [#allocation3], 0
    %s9 = scalar_lea.sflag [#allocation3], 1
    %10 = vsyncpa %s9, 0
    %11 = vsyncpa [#allocation4], 0
    %s12 = scalar_lea.sflag [#allocation4], 1
    %13 = vsyncpa %s12, 0
    loop: start=0, step=1, limit=4
    $region2: #{tpu_custom_call.1} parent=1 // loop_pre_header
      _
    $region3: #{tpu_custom_call.1} parent=1 // loop_header
      %s15 = sphi 0, %s19
      %p16 = scmp.ge.s32.totalorder %s15, 4
      %s22 = sphi 0, %s34
      %s23 = sphi 0, %s30
      %s24 = sphi 0, %s22
      %s25 = sphi 0, %s23
      %s26 = sphi 0, %s24
      %s27 = sphi 0, %s25
      %s35 = sphi 0, %s35
      %s37 = sphi 0, %s35
      %s38 = sphi 0, %s37
      %s52 = sphi 0, %s38
      %s60 = sphi 0, %s62
      %s63 = sphi 0, %s60
      %s64 = sphi 0, %s63
      %s80 = sphi 0, %s64
      %s88 = sphi 0, %s90
      %s91 = sphi 0, %s88
      %s92 = sphi 0, %s91
      %s108 = sphi 0, %s92
    $region4: #{tpu_custom_call.1} parent=1 // loop_header_branch
      %18 = sbr.rel (%p16) target = $region8
    $region5: #{tpu_custom_call.1} parent=1 // loop_body
      %s20 = ssub.s32 %s15, 1
      %s21 = ssub.s32 %s15, 2
      %s28 = sadd.s32 1, %s23
      %p29 = scmp.ge.s32.totalorder %s28, 1
      %s30 = scalar_select %p29, 0, %s28
      %s31 = sadd.s32 1, %s22
      %s32 = scalar_select %p29, %s31, %s22
      %p33 = scmp.ge.s32.totalorder %s32, 2
      %s34 = scalar_select %p33, 0, %s32
      %s36 = sadd.s32 %s35, 1
      %p39 = scmp.eq.s32.totalorder %s15, 1
      %p40 = scmp.ne.s32.totalorder %s35, %s37
      %p41 = scmp.eq.s32.totalorder %s15, 0
      %p42 = por %p40, %p41
      %p43 = scmp.ne.s32.totalorder %s35, %s37
      %p44 = scmp.eq.s32.totalorder %s20, 1
      %p45 = por %p43, %p44
      %p46 = scmp.ne.s32.totalorder %s37, %s38
      %p47 = scmp.eq.s32.totalorder %s20, 0
      %p48 = por %p46, %p47
      %p49 = scmp.ne.s32.totalorder %s37, %s38
      %p50 = scmp.eq.s32.totalorder %s21, 1
      %p51 = por %p49, %p50
      %p53 = scmp.ne.s32.totalorder %s38, %s52
      %p54 = scmp.eq.s32.totalorder %s21, 0
      %p55 = por %p53, %p54
      %s56 = ssub.s32 %s22, %s34
      %s57 = ssub.s32 %s23, %s30
      %s58 = sor.u32 %s56, %s57
      %p59 = scmp.eq.s32.totalorder %s58, 0
      %s61 = sadd.s32 %s60, 1
      %s62 = scalar_select %p59, %s60, %s61
      %p65 = pneg %p59
      %p66 = scmp.eq.s32.totalorder %s15, 1
      %p67 = por %p65, %p66
      %p68 = scmp.ne.s32.totalorder %s60, %s63
      %p69 = scmp.eq.s32.totalorder %s15, 0
      %p70 = por %p68, %p69
      %p71 = scmp.ne.s32.totalorder %s60, %s63
      %p72 = scmp.eq.s32.totalorder %s20, 1
      %p73 = por %p71, %p72
      %p74 = scmp.ne.s32.totalorder %s63, %s64
      %p75 = scmp.eq.s32.totalorder %s20, 0
      %p76 = por %p74, %p75
      %p77 = scmp.ne.s32.totalorder %s63, %s64
      %p78 = scmp.eq.s32.totalorder %s21, 1
      %p79 = por %p77, %p78
      %p81 = scmp.ne.s32.totalorder %s64, %s80
      %p82 = scmp.eq.s32.totalorder %s21, 0
      %p83 = por %p81, %p82
      %s84 = ssub.s32 %s22, %s34
      %s85 = ssub.s32 %s23, %s30
      %s86 = sor.u32 %s84, %s85
      %p87 = scmp.eq.s32.totalorder %s86, 0
      %s89 = sadd.s32 %s88, 1
      %s90 = scalar_select %p87, %s88, %s89
      %p93 = pneg %p87
      %p94 = scmp.eq.s32.totalorder %s15, 1
      %p95 = por %p93, %p94
      %p96 = scmp.ne.s32.totalorder %s88, %s91
      %p97 = scmp.eq.s32.totalorder %s15, 0
      %p98 = por %p96, %p97
      %p99 = scmp.ne.s32.totalorder %s88, %s91
      %p100 = scmp.eq.s32.totalorder %s20, 1
      %p101 = por %p99, %p100
      %p102 = scmp.ne.s32.totalorder %s91, %s92
      %p103 = scmp.eq.s32.totalorder %s20, 0
      %p104 = por %p102, %p103
      %p105 = scmp.ne.s32.totalorder %s91, %s92
      %p106 = scmp.eq.s32.totalorder %s21, 1
      %p107 = por %p105, %p106
      %p109 = scmp.ne.s32.totalorder %s92, %s108
      %p110 = scmp.eq.s32.totalorder %s21, 0
      %p111 = por %p109, %p110
      %p112 = scmp.le.s32.totalorder 1, %s15
      %p113 = scmp.lt.s32.totalorder %s15, 3
      %p114 = pnand %p112, %p113
      %p115 = pneg %p114
      // Predicated region
      $region9: #{tpu_custom_call.1} parent=5 // pred_check
        _
      $region10: #{tpu_custom_call.1} parent=5 // pred_check_branch
        %117 = sbr.rel (%p114) target = $region12
      $region11: #{tpu_custom_call.1} parent=5 // pred_region
        %s118 = ssub.s32 %s15, 1
        // Predicated region
        $region13: #{tpu_custom_call.1} parent=11 // pred_check
          %p119 = pneg %p48
        $region14: #{tpu_custom_call.1} parent=11 // pred_check_branch
          %121 = sbr.rel (%p119) target = $region16
        $region15: #{tpu_custom_call.1} parent=11 // pred_region
          %s123 = ssub.s32 16, 16
          %124 = vsyncadd [#allocation5], %s123
          %127 = dma.hbm_to_smem %s0, 16, [#allocation2], [#allocation5]
        $region16: #{tpu_custom_call.1} parent=11 // pred_fallthru
          _
      $region12: #{tpu_custom_call.1} parent=5 // pred_fallthru
        _
      %p128 = scmp.lt.s32.totalorder %s15, 2
      // Predicated region
      $region17: #{tpu_custom_call.1} parent=5 // pred_check
        %p129 = pneg %p128
      $region18: #{tpu_custom_call.1} parent=5 // pred_check_branch
        %131 = sbr.rel (%p129) target = $region20
      $region19: #{tpu_custom_call.1} parent=5 // pred_region
        // Predicated region
        $region21: #{tpu_custom_call.1} parent=19 // pred_check
          %p132 = pneg %p70
        $region22: #{tpu_custom_call.1} parent=19 // pred_check_branch
          %134 = sbr.rel (%p132) target = $region24
        $region23: #{tpu_custom_call.1} parent=19 // pred_region
          %s135 = sand.u32 %s60, 1
          %s136 = scalar_lea.sflag [#allocation3], %s135
          %s137 = sand.u32 %s60, 1
          %s138 = smul.addr %s137, 8
          %s139 = scalar_lea.vmem [#allocation6], %s138
          %s140 = smul.u32 2, %s23
          %s142 = ssub.s32 128, 128
          %143 = vsyncadd %s136, %s142
          %s144 = smul.addr %s22, 2
          %s145 = sadd.s32 %s140, %s144
          %s146 = smul.addr %s145, 64
          %s147 = scalar_lea.hbm %s1, %s146
          %s149 = sshll.u32 %s139, 4
          %s150 = int_to_ptr.vmem [resolvable:$true] %s149
          %152 = dma.hbm_to_vmem [thread:$0]  %s147, 128, %s150, %s136
        $region24: #{tpu_custom_call.1} parent=19 // pred_fallthru
          _
      $region20: #{tpu_custom_call.1} parent=5 // pred_fallthru
        _
      %p153 = scmp.le.s32.totalorder 1, %s15
      %p154 = scmp.lt.s32.totalorder %s15, 3
      %p155 = pnand %p153, %p154
      %p156 = pneg %p155
      // Predicated region
      $region25: #{tpu_custom_call.1} parent=5 // pred_check
        _
      $region26: #{tpu_custom_call.1} parent=5 // pred_check_branch
        %158 = sbr.rel (%p155) target = $region28
      $region27: #{tpu_custom_call.1} parent=5 // pred_region
        %s159 = ssub.s32 %s15, 1
        // Predicated region
        $region29: #{tpu_custom_call.1} parent=27 // pred_check
          %p160 = pneg %p48
        $region30: #{tpu_custom_call.1} parent=27 // pred_check_branch
          %162 = sbr.rel (%p160) target = $region32
        $region31: #{tpu_custom_call.1} parent=27 // pred_region
          %163 = dma.done [#allocation5], 16
        $region32: #{tpu_custom_call.1} parent=27 // pred_fallthru
          _
        %s164 = sand.u32 %s63, 1
        %s165 = scalar_lea.sflag [#allocation3], %s164
        %s166 = sand.u32 %s63, 1
        %s167 = smul.addr %s166, 8
        %s168 = scalar_lea.vmem [#allocation6], %s167
        // Predicated region
        $region33: #{tpu_custom_call.1} parent=27 // pred_check
          %p169 = pneg %p76
        $region34: #{tpu_custom_call.1} parent=27 // pred_check_branch
          %171 = sbr.rel (%p169) target = $region36
        $region35: #{tpu_custom_call.1} parent=27 // pred_region
          %172 = dma.done %s165, 128
        $region36: #{tpu_custom_call.1} parent=27 // pred_fallthru
          _
        %173 = sfence
        %p174 = pneg %p48
        %p175 = pneg %p45
        %s176 = sand.u32 %s63, 1
        %s177 = scalar_lea.sflag [#allocation3], %s176
        %s178 = sand.u32 %s63, 1
        %s179 = smul.addr %s178, 8
        %s180 = scalar_lea.vmem [#allocation6], %s179
        %p181 = pneg %p76
        %p182 = pneg %p73
        %p183 = pneg %p104
        %p184 = pneg %p101
        %s185 = sand.u32 %s91, 1
        %s186 = scalar_lea.sflag [#allocation4], %s185
        %s187 = sand.u32 %s91, 1
        %s188 = smul.addr %s187, 2
        %s189 = scalar_lea.vmem [#allocation7], %s188
        %s190 = smul.u32 2, %s25
        %s191 = smul.u32 2, %s25
        %v192 = vld [vmem:[%s168] sm:$0xff]
        %v194 = vcombine.high %v192, %v192
        %vm196 = vcmask 1043456
        %v197 = vsel %vm196, %v192, 0.0
        %v198 = vrot.slane %v197, 4
        %v199 = vadd.f32 %v197, %v198
        %v200 = vrot.slane %v199, 2
        %v201 = vadd.f32 %v199, %v200
        %v202 = vrot.slane %v201, 1
        %v203 = vadd.f32 %v201, %v202
        %v204 = vsel %vm196, %v194, 0.0
        %v205 = vrot.slane %v204, 4
        %v206 = vadd.f32 %v204, %v205
        %v207 = vrot.slane %v206, 2
        %v208 = vadd.f32 %v206, %v207
        %v209 = vrot.slane %v208, 1
        %v210 = vadd.f32 %v208, %v209
        %v211 = vadd.f32 %v203, 0.0
        %v212 = vadd.f32 %v210, 0.0
        %v213 = vmul.f32 %v211, 0.25
        %v214 = vmul.f32 %v212, 0.25
        %v217 = vcombine.low %v213, %v214
        %v219 = vsub.f32 %v192, %v217
        %v220 = vmul.f32 %v219, %v219
        %v221 = vmul.f32 %v220, %v219
        %v223 = vcombine.high %v221, %v221
        %v225 = vsel %vm196, %v221, 0.0
        %v226 = vrot.slane %v225, 4
        %v227 = vadd.f32 %v225, %v226
        %v228 = vrot.slane %v227, 2
        %v229 = vadd.f32 %v227, %v228
        %v230 = vrot.slane %v229, 1
        %v231 = vadd.f32 %v229, %v230
        %v232 = vsel %vm196, %v223, 0.0
        %v233 = vrot.slane %v232, 4
        %v234 = vadd.f32 %v232, %v233
        %v235 = vrot.slane %v234, 2
        %v236 = vadd.f32 %v234, %v235
        %v237 = vrot.slane %v236, 1
        %v238 = vadd.f32 %v236, %v237
        %v239 = vadd.f32 %v231, 0.0
        %v240 = vadd.f32 %v238, 0.0
        %v241 = vmul.f32 %v239, 0.25
        %v242 = vmul.f32 %v240, 0.25
        %s243 = sld [smem:[#allocation2]]
        %v244 = vstv %s243
        %v245 = vmul.f32 %v244, %v213
        %v246 = vmul.f32 %v244, %v214
        %s247 = sld [smem:[#allocation2 + $0x1]]
        %v248 = vstv %s247
        %v249 = vmul.f32 %v248, %v241
        %v250 = vmul.f32 %v248, %v242
        %v251 = vadd.f32 %v245, %v249
        %v252 = vadd.f32 %v246, %v250
        %v253 = vmax.f32 %v251, 0.0
        %v254 = vmax.f32 %v252, 0.0
        %v257 = vcombine.low %v253, %v254
        %v259 = vunpack.c.l.s4 1966171168
        %v260 = vunpack.c.0.s8 %v259
        %v261 = vlaneseq
        %v262 = vshrl.u32 %v261, 7
        %v263 = vsub.s32 %v260, %v262
        %v264 = vrot.slane %v257, %v263
        %v266 = vunpack.c.l.s4 1966171168
        %v267 = vunpack.c.0.s8 %v266
        %v268 = vlaneseq
        %v269 = vshrl.u32 %v268, 7
        %v270 = vsub.s32 %v267, %v269
        %v271 = vrot.slane %v264, %v270
        %v273 = vlaneseq
        %vm274 = vcmp.ge.s32.totalorder %v273, 0
        %vm275 = vcmp.lt.s32.totalorder %v273, 256
        %vm276 = vmand %vm274, %vm275
        %277 = vst.msk [vmem:[%s189] sm:$0x3] %vm276, %v271
        %s278 = sand.u32 %s91, 1
        %s279 = scalar_lea.sflag [#allocation4], %s278
        %s280 = sand.u32 %s91, 1
        %s281 = smul.addr %s280, 2
        %s282 = scalar_lea.vmem [#allocation7], %s281
        // Predicated region
        $region37: #{tpu_custom_call.1} parent=27 // pred_check
          %p283 = pneg %p101
        $region38: #{tpu_custom_call.1} parent=27 // pred_check_branch
          %285 = sbr.rel (%p283) target = $region40
        $region39: #{tpu_custom_call.1} parent=27 // pred_region
          %s286 = smul.u32 2, %s25
          %s288 = ssub.s32 32, 32
          %289 = vsyncadd %s279, %s288
          %s290 = smul.addr %s24, 2
          %s291 = sadd.s32 %s286, %s290
          %s292 = smul.addr %s291, 16
          %s293 = scalar_lea.hbm %s2, %s292
          %s295 = sshll.u32 %s282, 4
          %s296 = int_to_ptr.vmem [resolvable:$true] %s295
          %298 = dma.vmem_to_hbm [thread:$0]  %s296, 32, %s293, %s279
        $region40: #{tpu_custom_call.1} parent=27 // pred_fallthru
          _
      $region28: #{tpu_custom_call.1} parent=5 // pred_fallthru
        _
      %p299 = scmp.le.s32.totalorder 2, %s15
      // Predicated region
      $region41: #{tpu_custom_call.1} parent=5 // pred_check
        %p300 = pneg %p299
      $region42: #{tpu_custom_call.1} parent=5 // pred_check_branch
        %302 = sbr.rel (%p300) target = $region44
      $region43: #{tpu_custom_call.1} parent=5 // pred_region
        %s303 = ssub.s32 %s15, 2
        // Predicated region
        $region45: #{tpu_custom_call.1} parent=43 // pred_check
          %p304 = pneg %p107
        $region46: #{tpu_custom_call.1} parent=43 // pred_check_branch
          %306 = sbr.rel (%p304) target = $region48
        $region47: #{tpu_custom_call.1} parent=43 // pred_region
          %s307 = sand.u32 %s92, 1
          %s308 = scalar_lea.sflag [#allocation4], %s307
          %s309 = sand.u32 %s92, 1
          %s310 = smul.addr %s309, 2
          %s311 = scalar_lea.vmem [#allocation7], %s310
          %312 = dma.done %s308, 32
        $region48: #{tpu_custom_call.1} parent=43 // pred_fallthru
          _
      $region44: #{tpu_custom_call.1} parent=5 // pred_fallthru
        _
    $region6: #{tpu_custom_call.1} parent=1 // loop_footer
      %s19 = sadd.s32 1, %s15
    $region7: #{tpu_custom_call.1} parent=1 // loop_footer_branch
      %14 = sbr.rel target = $region3
    $region8: #{tpu_custom_call.1} parent=1 // loop_exit
      _
    %313 = vsyncpa [#allocation3], 1
    %s314 = scalar_lea.sflag [#allocation3], 1
    %315 = vsyncpa %s314, 1
    %316 = vsyncpa [#allocation4], 1
    %s317 = scalar_lea.sflag [#allocation4], 1
    %318 = vsyncpa %s317, 1
    %319 = vsyncpa [#allocation5], 1
    %s320 = scalar_lea.sflag [#allocation5], 1
    %321 = vsyncpa %s320, 1

</llo_original>
